<compile_context>
chip_gen: v6e
topology: v6e:2x2x1
jax: 0.10.0
libtpu: 0.0.40
codegen_flags: <defaults>
</compile_context>

<pallas_src>
import jax
import jax.numpy as jnp
from jax.experimental import pallas as pl
from jax.experimental.pallas import tpu as pltpu


_MIN_TILE = 1024  # multi-block tiles: output blocks become (tile//128, 128), >= 8 sublanes


def _fc_kernel_packed(x_ref, w1_ref, b1_ref, w2_ref, b2_ref, w3_ref, b3_ref, o_ref):
    """output_length == 1 path; writes a lane-packed (tb // 128, 128) block."""
    # dense1 + bias + ReLU  (bf16 MXU feed, f32 accumulate)
    h1 = jnp.dot(x_ref[...], w1_ref[...], preferred_element_type=jnp.float32)
    h1 = jnp.maximum(h1 + b1_ref[...], 0.0)                      # (tb, 64) f32

    # dropout1: identity in eval mode.
    # TODO(synk): training-mode dropout (pltpu.prng_*) not implemented.

    # dense2 + bias + ReLU
    h2 = jnp.dot(h1.astype(jnp.bfloat16), w2_ref[...],
                 preferred_element_type=jnp.float32)
    h2 = jnp.maximum(h2 + b2_ref[...], 0.0)                      # (tb, 16) f32

    # dense3 (16 -> 1) on the VPU: broadcast-mul + lane reduce (no MXU push).
    h3 = jnp.sum(h2 * w3_ref[...], axis=-1, keepdims=True) + b3_ref[...]  # (tb, 1)

    # Exact sigmoid in f32 (exp goes to the EUP slot).
    sig = 1.0 / (1.0 + jnp.exp(-h3))

    # Lane-dense store: (tb, 1) -> (tb // 128, 128) slab (unmasked vst).
    o_ref[...] = sig.reshape(o_ref.shape).astype(o_ref.dtype)


def _fc_kernel_general(x_ref, w1_ref, b1_ref, w2_ref, b2_ref, w3_ref, b3_ref, o_ref):
    """Fallback for output_length > 1: plain (tb, out_dim) output blocks."""
    h1 = jnp.maximum(
        jnp.dot(x_ref[...], w1_ref[...], preferred_element_type=jnp.float32)
        + b1_ref[...], 0.0)
    # TODO(synk): training-mode dropout (pltpu.prng_*) not implemented.
    h2 = jnp.maximum(
        jnp.dot(h1.astype(jnp.bfloat16), w2_ref[...],
                preferred_element_type=jnp.float32) + b2_ref[...], 0.0)
    h3 = jnp.dot(h2.astype(jnp.bfloat16), w3_ref[...].astype(jnp.bfloat16),
                 preferred_element_type=jnp.float32) + b3_ref[...]
    o_ref[...] = (1.0 / (1.0 + jnp.exp(-h3))).astype(o_ref.dtype)


def _round_up(n: int, m: int) -> int:
    return ((n + m - 1) // m) * m


def _choose_tile(b128: int, block_batch: int) -> int:
    """Batch-tile rows. Single full block for small batches; otherwise a
    multiple of 1024 rows chosen so the grid has >= 2 steps (v7x megacore)."""
    if b128 < 2 * _MIN_TILE:
        return b128  # one full-array block: legal shapes, no pipeline overhead
    bb = max(_MIN_TILE, (block_batch // _MIN_TILE) * _MIN_TILE)
    half = max(_MIN_TILE, (b128 // 2 // _MIN_TILE) * _MIN_TILE)
    return min(bb, half)


def fully_connected_forward(x, params, *, block_batch=8192):
    """x: (B, input_length) float32; params: dict of (in,out) weights / (1,out) biases."""
    w1, b1 = params["w1"], params["b1"]
    w2, b2 = params["w2"], params["b2"]
    w3, b3 = params["w3"], params["b3"]
    B, d_in = x.shape
    hidden1, hidden2 = w1.shape[1], w2.shape[1]
    out_dim = w3.shape[1]

    b128 = _round_up(B, 128)
    tb = _choose_tile(b128, block_batch)
    b_pad = _round_up(b128, tb)
    grid = (b_pad // tb,)

    if b_pad != B:
        x = jnp.pad(x, ((0, b_pad - B), (0, 0)))

    # Pre-cast the streamed input and the MXU weights to bf16 at the call
    # boundary (halves the dominant x HBM stream; accumulation stays f32).
    x_bf = x.astype(jnp.bfloat16)
    w1_bf = w1.astype(jnp.bfloat16)
    w2_bf = w2.astype(jnp.bfloat16)

    def full2d(arr):  # whole-array, grid-invariant block (stays VMEM-resident)
        return pl.BlockSpec(arr.shape, lambda i: (0, 0))

    flops = 2 * b_pad * (d_in * hidden1 + hidden1 * hidden2 + hidden2 * out_dim)
    param_bytes = 2 * (w1.size + w2.size) + 4 * (b1.size + b2.size + w3.size + b3.size)
    bytes_accessed = 2 * b_pad * d_in + 4 * b_pad * out_dim + param_bytes

    # VMEM budget: double-buffered bf16 x tile + double-buffered f32 output
    # tile + resident params + f32/bf16 intermediates, 2x headroom, clamped to
    # 48 MiB (safe on v7x's 64 MiB; raises v5e/v6e's 16/32 MiB scoped default).
    work_bytes = (2 * tb * d_in * 2 + 2 * tb * max(out_dim, 1) * 4
                  + tb * (hidden1 + hidden2) * 6 + param_bytes)
    vmem_limit = int(min(48 * 2**20, max(32 * 2**20, 2 * work_bytes)))

    compiler_params = pltpu.CompilerParams(
        dimension_semantics=("parallel",),  # 2 TensorCores split the grid on v7x
        vmem_limit_bytes=vmem_limit)
    cost = pl.CostEstimate(flops=flops, transcendentals=b_pad * out_dim,
                           bytes_accessed=bytes_accessed)

    # x is the only streamed operand; default double-buffering hides its DMA
    # at these tile sizes. (pipeline_mode=pl.Buffered(3) is a further option
    # on v5e if the x copy ever shows up exposed.)
    x_spec = pl.BlockSpec((tb, d_in), lambda i: (i, 0))

    if out_dim == 1:
        # Lane-dense output slab: (b_pad // 128, 128), reshaped to (B, 1) below.
        w3_row = w3.reshape(1, hidden2)  # (1, 16) f32 row for the VPU epilogue
        out = pl.pallas_call(
            _fc_kernel_packed,
            out_shape=jax.ShapeDtypeStruct((b_pad // 128, 128), jnp.float32),
            grid=grid,
            in_specs=[x_spec,
                      full2d(w1_bf), full2d(b1),
                      full2d(w2_bf), full2d(b2),
                      full2d(w3_row), full2d(b3)],
            out_specs=pl.BlockSpec((tb // 128, 128), lambda i: (i, 0)),
            compiler_params=compiler_params,
            cost_estimate=cost,
        )(x_bf, w1_bf, b1, w2_bf, b2, w3_row, b3)
        return out.reshape(b_pad, 1)[:B]

    # General output_length > 1 path (MXU layer 3, plain (tb, out_dim) blocks).
    out = pl.pallas_call(
        _fc_kernel_general,
        out_shape=jax.ShapeDtypeStruct((b_pad, out_dim), jnp.float32),
        grid=grid,
        in_specs=[x_spec,
                  full2d(w1_bf), full2d(b1),
                  full2d(w2_bf), full2d(b2),
                  full2d(w3), full2d(b3)],
        out_specs=pl.BlockSpec((tb, out_dim), lambda i: (i, 0)),
        compiler_params=compiler_params,
        cost_estimate=cost,
    )(x_bf, w1_bf, b1, w2_bf, b2, w3, b3)
    return out[:B]


def init_params(key, input_length, output_length):
    """Deterministic synthetic parameters (PyTorch-style uniform init)."""
    ks = jax.random.split(key, 6)

    def linear(kw, kb, fan_in, fan_out):
        bound = 1.0 / jnp.sqrt(fan_in)
        # Stored as (in, out) so the kernel computes x @ W (== x @ W_torch^T).
        w = jax.random.uniform(kw, (fan_in, fan_out), jnp.float32, -bound, bound)
        b = jax.random.uniform(kb, (1, fan_out), jnp.float32, -bound, bound)
        return w, b

    w1, b1 = linear(ks[0], ks[1], input_length, 64)
    w2, b2 = linear(ks[2], ks[3], 64, 16)
    w3, b3 = linear(ks[4], ks[5], 16, output_length)
    return {"w1": w1, "b1": b1, "w2": w2, "b2": b2, "w3": w3, "b3": b3}


if __name__ == "__main__":
    key = jax.random.PRNGKey(0)
    k_x, k_p = jax.random.split(key)

    batch = 256            # small batch -> single full-array block, grid=(1,)
    input_length = 32      # config.input_length
    output_length = 1      # config.output_length

    x = jax.random.normal(k_x, (batch, input_length), jnp.float32)
    params = init_params(k_p, input_length, output_length)

    out = fully_connected_forward(x, params)
    out = jax.block_until_ready(out)

    # Reference in plain f32 JAX (same math; kernel feeds the MXU bf16, so
    # compare with a bf16-appropriate tolerance).
    def ref(xv, p):
        h = jnp.maximum(xv @ p["w1"] + p["b1"], 0.0)
        h = jnp.maximum(h @ p["w2"] + p["b2"], 0.0)
        return jax.nn.sigmoid(h @ p["w3"] + p["b3"])

    ref_out = ref(x, params)
    assert out.shape == (batch, output_length), out.shape
    max_err = float(jnp.max(jnp.abs(out - ref_out)))
    assert max_err < 2e-2, max_err

    print("KERNEL_OK")
</pallas_src>

<mosaic_0001>
module attributes {stable_mosaic.version = 11 : i64} {
  func.func @_fc_kernel_packed(%arg0: i32, %arg1: memref<256x32xbf16, #tpu.memory_space<vmem>>, %arg2: memref<32x64xbf16, #tpu.memory_space<vmem>>, %arg3: memref<1x64xf32, #tpu.memory_space<vmem>>, %arg4: memref<64x16xbf16, #tpu.memory_space<vmem>>, %arg5: memref<1x16xf32, #tpu.memory_space<vmem>>, %arg6: memref<1x16xf32, #tpu.memory_space<vmem>>, %arg7: memref<1x1xf32, #tpu.memory_space<vmem>>, %arg8: memref<2x128xf32, #tpu.memory_space<vmem>>) attributes {dimension_semantics = [#tpu.dimension_semantics<parallel>], iteration_bounds = array<i64: 1>, scalar_prefetch = 0 : i64, scratch_operands = 0 : i64, tpu.core_type = #tpu.core_type<tc>, window_params = [{transform_indices = @transform_0, window_bounds = array<i64: 256, 32>}, {pipeline_mode = #tpu.pipeline_mode<synchronous>, transform_indices = @transform_1, window_bounds = array<i64: 32, 64>}, {pipeline_mode = #tpu.pipeline_mode<synchronous>, transform_indices = @transform_2, window_bounds = array<i64: 1, 64>}, {pipeline_mode = #tpu.pipeline_mode<synchronous>, transform_indices = @transform_3, window_bounds = array<i64: 64, 16>}, {pipeline_mode = #tpu.pipeline_mode<synchronous>, transform_indices = @transform_4, window_bounds = array<i64: 1, 16>}, {pipeline_mode = #tpu.pipeline_mode<synchronous>, transform_indices = @transform_5, window_bounds = array<i64: 1, 16>}, {pipeline_mode = #tpu.pipeline_mode<synchronous>, transform_indices = @transform_6, window_bounds = array<i64: 1, 1>}, {transform_indices = @transform_7, window_bounds = array<i64: 2, 128>}]} {
    %c0 = arith.constant 0 : index
    %c0_0 = arith.constant 0 : index
    %0 = vector.load %arg1[%c0, %c0_0] : memref<256x32xbf16, #tpu.memory_space<vmem>>, vector<256x32xbf16>
    %c0_1 = arith.constant 0 : index
    %c0_2 = arith.constant 0 : index
    %1 = vector.load %arg2[%c0_1, %c0_2] : memref<32x64xbf16, #tpu.memory_space<vmem>>, vector<32x64xbf16>
    %cst = arith.constant dense<0.000000e+00> : vector<256x64xf32>
    %2 = tpu.matmul %0, %1, %cst {dimension_numbers = #tpu.dot_dimension_numbers<[1], [0], [0], [1], [0, 0, 1, 1], [], []>} : vector<256x32xbf16>, vector<32x64xbf16>, vector<256x64xf32> -> vector<256x64xf32>
    %c0_3 = arith.constant 0 : index
    %c0_4 = arith.constant 0 : index
    %3 = vector.load %arg3[%c0_3, %c0_4] : memref<1x64xf32, #tpu.memory_space<vmem>>, vector<1x64xf32>
    %4 = vector.broadcast %3 : vector<1x64xf32> to vector<256x64xf32>
    %5 = arith.addf %2, %4 : vector<256x64xf32>
    %cst_5 = arith.constant 0.000000e+00 : f32
    %6 = vector.broadcast %cst_5 : f32 to vector<256x64xf32>
    %7 = arith.maximumf %5, %6 : vector<256x64xf32>
    %8 = arith.truncf %7 : vector<256x64xf32> to vector<256x64xbf16>
    %c0_6 = arith.constant 0 : index
    %c0_7 = arith.constant 0 : index
    %9 = vector.load %arg4[%c0_6, %c0_7] : memref<64x16xbf16, #tpu.memory_space<vmem>>, vector<64x16xbf16>
    %cst_8 = arith.constant dense<0.000000e+00> : vector<256x16xf32>
    %10 = tpu.matmul %8, %9, %cst_8 {dimension_numbers = #tpu.dot_dimension_numbers<[1], [0], [0], [1], [0, 0, 1, 1], [], []>} : vector<256x64xbf16>, vector<64x16xbf16>, vector<256x16xf32> -> vector<256x16xf32>
    %c0_9 = arith.constant 0 : index
    %c0_10 = arith.constant 0 : index
    %11 = vector.load %arg5[%c0_9, %c0_10] : memref<1x16xf32, #tpu.memory_space<vmem>>, vector<1x16xf32>
    %12 = vector.broadcast %11 : vector<1x16xf32> to vector<256x16xf32>
    %13 = arith.addf %10, %12 : vector<256x16xf32>
    %cst_11 = arith.constant 0.000000e+00 : f32
    %14 = vector.broadcast %cst_11 : f32 to vector<256x16xf32>
    %15 = arith.maximumf %13, %14 : vector<256x16xf32>
    %c0_12 = arith.constant 0 : index
    %c0_13 = arith.constant 0 : index
    %16 = vector.load %arg6[%c0_12, %c0_13] : memref<1x16xf32, #tpu.memory_space<vmem>>, vector<1x16xf32>
    %17 = vector.broadcast %16 : vector<1x16xf32> to vector<256x16xf32>
    %18 = arith.mulf %15, %17 : vector<256x16xf32>
    %cst_14 = arith.constant dense<0.000000e+00> : vector<256xf32>
    %19 = vector.multi_reduction <add>, %18, %cst_14 [1] : vector<256x16xf32> to vector<256xf32>
    %20 = vector.shape_cast %19 : vector<256xf32> to vector<256x1xf32>
    %c0_15 = arith.constant 0 : index
    %c0_16 = arith.constant 0 : index
    %21 = vector.load %arg7[%c0_15, %c0_16] : memref<1x1xf32, #tpu.memory_space<vmem>>, vector<1x1xf32>
    %22 = vector.broadcast %21 : vector<1x1xf32> to vector<256x1xf32>
    %23 = arith.addf %20, %22 : vector<256x1xf32>
    %cst_17 = arith.constant 0.000000e+00 : f32
    %24 = vector.broadcast %cst_17 : f32 to vector<256x1xf32>
    %25 = arith.subf %24, %23 : vector<256x1xf32>
    %26 = math.exp %25 : vector<256x1xf32>
    %cst_18 = arith.constant 1.000000e+00 : f32
    %27 = vector.broadcast %cst_18 : f32 to vector<256x1xf32>
    %28 = arith.addf %27, %26 : vector<256x1xf32>
    %cst_19 = arith.constant 1.000000e+00 : f32
    %29 = vector.broadcast %cst_19 : f32 to vector<256x1xf32>
    %30 = arith.divf %29, %28 : vector<256x1xf32>
    %31 = vector.shape_cast %30 : vector<256x1xf32> to vector<2x128xf32>
    %c0_20 = arith.constant 0 : index
    %c0_21 = arith.constant 0 : index
    %32 = vector.load %arg8[%c0_20, %c0_21] : memref<2x128xf32, #tpu.memory_space<vmem>>, vector<2x128xf32>
    tpu.vector_store %arg8[%c0_20, %c0_21], %31 {strides = array<i32>} : memref<2x128xf32, #tpu.memory_space<vmem>>, vector<2x128xf32>,
    return
  }
  func.func @transform_0(%arg0: i32) -> (i32, i32) {
    %c0_i32 = arith.constant 0 : i32
    %c0_i32_0 = arith.constant 0 : i32
    return %arg0, %c0_i32 : i32, i32
  }
  func.func @transform_1(%arg0: i32) -> (i32, i32) {
    %c0_i32 = arith.constant 0 : i32
    %c0_i32_0 = arith.constant 0 : i32
    %c0_i32_1 = arith.constant 0 : i32
    return %c0_i32, %c0_i32_0 : i32, i32
  }
  func.func @transform_2(%arg0: i32) -> (i32, i32) {
    %c0_i32 = arith.constant 0 : i32
    %c0_i32_0 = arith.constant 0 : i32
    %c0_i32_1 = arith.constant 0 : i32
    return %c0_i32, %c0_i32_0 : i32, i32
  }
  func.func @transform_3(%arg0: i32) -> (i32, i32) {
    %c0_i32 = arith.constant 0 : i32
    %c0_i32_0 = arith.constant 0 : i32
    %c0_i32_1 = arith.constant 0 : i32
    return %c0_i32, %c0_i32_0 : i32, i32
  }
  func.func @transform_4(%arg0: i32) -> (i32, i32) {
    %c0_i32 = arith.constant 0 : i32
    %c0_i32_0 = arith.constant 0 : i32
    %c0_i32_1 = arith.constant 0 : i32
    return %c0_i32, %c0_i32_0 : i32, i32
  }
  func.func @transform_5(%arg0: i32) -> (i32, i32) {
    %c0_i32 = arith.constant 0 : i32
    %c0_i32_0 = arith.constant 0 : i32
    %c0_i32_1 = arith.constant 0 : i32
    return %c0_i32, %c0_i32_0 : i32, i32
  }
  func.func @transform_6(%arg0: i32) -> (i32, i32) {
    %c0_i32 = arith.constant 0 : i32
    %c0_i32_0 = arith.constant 0 : i32
    %c0_i32_1 = arith.constant 0 : i32
    return %c0_i32, %c0_i32_0 : i32, i32
  }
  func.func @transform_7(%arg0: i32) -> (i32, i32) {
    %c0_i32 = arith.constant 0 : i32
    %c0_i32_0 = arith.constant 0 : i32
    return %arg0, %c0_i32 : i32, i32
  }
}

</mosaic_0001>

<llo_original>
// kernel: tpu_custom_call.1
$region0: #{tpu_custom_call.1}
  #allocation0 [shape = 'u32[]', space=smem, size = 0x4, offset = 0x4, fixed_abs, tag = 'smem constant byte address 0x4 - core index']
  #allocation1 [shape = 'u32[144,128]{1,0:T(1,128)}', space=vmem, size = 0x12000, scoped, tag = 'internal scratch']
  #allocation2 [shape = 'f32[1,1]{1,0:T(1,128)S(1)}', space=vmem, size = 0x200, scoped, tag = 'scoped memory for tpu_custom_call.1']
  %s0 = inlined_call_operand.vmem [shape: bf16[256,32], index: 0, kind: input, shape index: {}]
  %s1 = inlined_call_operand.vmem [shape: bf16[32,64], index: 1, kind: input, shape index: {}]
  %s2 = inlined_call_operand.vmem [shape: f32[1,64], index: 2, kind: input, shape index: {}]
  %s3 = inlined_call_operand.vmem [shape: bf16[64,16], index: 3, kind: input, shape index: {}]
  %s4 = inlined_call_operand.vmem [shape: f32[1,16], index: 4, kind: input, shape index: {}]
  %s5 = inlined_call_operand.vmem [shape: f32[1,16], index: 5, kind: input, shape index: {}]
  %s6 = inlined_call_operand.<no memory space> [shape: f32[1,1], index: 6, kind: input, shape index: {}]
  %s7 = inlined_call_operand.hbm [shape: f32[2,128], index: 7, kind: output, shape index: {}]
  %s8 = sld [smem:[#allocation0]]
  $region38: #{tpu_custom_call.1} parent=0
    _
  %s10 = ssub.s32 1, %s8
  %s11 = scalar_select 0, %s10, %s8
  %v12 = vstv %s6
  %13 = vst [vmem:[#allocation2] sm:$0x1] %v12
  $region1: #{tpu_custom_call.1} parent=0
    #allocation3 [shape = 'u8[1024]{0}', space=vmem, size = 0x400, scoped, tag = 'output window, operand 0, single buffered']
    #allocation4 [shape = 's32[1]{0}', space=sflag, size = 0x4, scoped, tag = 'scoped memory for tpu_custom_call.1']
    %14 = vsyncpa [#allocation4], 0
    // Predicated region
    $region2: #{tpu_custom_call.1} parent=1 // pred_check
      _
    $region3: #{tpu_custom_call.1} parent=1 // pred_check_branch
      %16 = sbr.rel (0) target = $region5
    $region4: #{tpu_custom_call.1} parent=1 // pred_region
      _
    $region5: #{tpu_custom_call.1} parent=1 // pred_fallthru
      _
    // Predicated region
    $region6: #{tpu_custom_call.1} parent=1 // pred_check
      _
    $region7: #{tpu_custom_call.1} parent=1 // pred_check_branch
      %18 = sbr.rel (0) target = $region9
    $region8: #{tpu_custom_call.1} parent=1 // pred_region
      _
    $region9: #{tpu_custom_call.1} parent=1 // pred_fallthru
      _
    // Predicated region
    $region10: #{tpu_custom_call.1} parent=1 // pred_check
      _
    $region11: #{tpu_custom_call.1} parent=1 // pred_check_branch
      %20 = sbr.rel (0) target = $region13
    $region12: #{tpu_custom_call.1} parent=1 // pred_region
      _
    $region13: #{tpu_custom_call.1} parent=1 // pred_fallthru
      _
    // Predicated region
    $region14: #{tpu_custom_call.1} parent=1 // pred_check
      _
    $region15: #{tpu_custom_call.1} parent=1 // pred_check_branch
      %22 = sbr.rel (0) target = $region17
    $region16: #{tpu_custom_call.1} parent=1 // pred_region
      _
    $region17: #{tpu_custom_call.1} parent=1 // pred_fallthru
      _
    // Predicated region
    $region18: #{tpu_custom_call.1} parent=1 // pred_check
      _
    $region19: #{tpu_custom_call.1} parent=1 // pred_check_branch
      %24 = sbr.rel (0) target = $region21
    $region20: #{tpu_custom_call.1} parent=1 // pred_region
      _
    $region21: #{tpu_custom_call.1} parent=1 // pred_fallthru
      _
    // Predicated region
    $region22: #{tpu_custom_call.1} parent=1 // pred_check
      _
    $region23: #{tpu_custom_call.1} parent=1 // pred_check_branch
      %26 = sbr.rel (0) target = $region25
    $region24: #{tpu_custom_call.1} parent=1 // pred_region
      _
    $region25: #{tpu_custom_call.1} parent=1 // pred_fallthru
      _
    // Predicated region
    $region26: #{tpu_custom_call.1} parent=1 // pred_check
      _
    $region27: #{tpu_custom_call.1} parent=1 // pred_check_branch
      %28 = sbr.rel (0) target = $region29
    $region28: #{tpu_custom_call.1} parent=1 // pred_region
      _
    $region29: #{tpu_custom_call.1} parent=1 // pred_fallthru
      _
    %v30 = vld [vmem:[%s0] sm:$0xf]
    %v31 = vld [vmem:[%s0 + $0x4] sm:$0xf]
    %v32 = vld [vmem:[%s0 + $0x8] sm:$0xf]
    %v33 = vld [vmem:[%s0 + $0xc] sm:$0xf]
    %v34 = vld [vmem:[%s0 + $0x10] sm:$0xf]
    %v35 = vld [vmem:[%s0 + $0x14] sm:$0xf]
    %v36 = vld [vmem:[%s0 + $0x18] sm:$0xf]
    %v37 = vld [vmem:[%s0 + $0x1c] sm:$0xf]
    %v38 = vld [vmem:[%s0 + $0x20] sm:$0xf]
    %v39 = vld [vmem:[%s0 + $0x24] sm:$0xf]
    %v40 = vld [vmem:[%s0 + $0x28] sm:$0xf]
    %v41 = vld [vmem:[%s0 + $0x2c] sm:$0xf]
    %v42 = vld [vmem:[%s0 + $0x30] sm:$0xf]
    %v43 = vld [vmem:[%s0 + $0x34] sm:$0xf]
    %v44 = vld [vmem:[%s0 + $0x38] sm:$0xf]
    %v45 = vld [vmem:[%s0 + $0x3c] sm:$0xf]
    %v46 = vld [vmem:[%s0 + $0x40] sm:$0xf]
    %v47 = vld [vmem:[%s0 + $0x44] sm:$0xf]
    %v48 = vld [vmem:[%s0 + $0x48] sm:$0xf]
    %v49 = vld [vmem:[%s0 + $0x4c] sm:$0xf]
    %v50 = vld [vmem:[%s0 + $0x50] sm:$0xf]
    %v51 = vld [vmem:[%s0 + $0x54] sm:$0xf]
    %v52 = vld [vmem:[%s0 + $0x58] sm:$0xf]
    %v53 = vld [vmem:[%s0 + $0x5c] sm:$0xf]
    %v54 = vld [vmem:[%s0 + $0x60] sm:$0xf]
    %v55 = vld [vmem:[%s0 + $0x64] sm:$0xf]
    %v56 = vld [vmem:[%s0 + $0x68] sm:$0xf]
    %v57 = vld [vmem:[%s0 + $0x6c] sm:$0xf]
    %v58 = vld [vmem:[%s0 + $0x70] sm:$0xf]
    %v59 = vld [vmem:[%s0 + $0x74] sm:$0xf]
    %v60 = vld [vmem:[%s0 + $0x78] sm:$0xf]
    %v61 = vld [vmem:[%s0 + $0x7c] sm:$0xf]
    %v62 = vld [vmem:[%s1] sm:$0xf]
    %v63 = vld [vmem:[%s1 + $0x4] sm:$0xf]
    %v64 = vld [vmem:[%s1 + $0x8] sm:$0xf]
    %v65 = vld [vmem:[%s1 + $0xc] sm:$0xf]
    %v66 = vld [vmem:[%s2] sm:$0x1]
    %v68 = vlaneseq
    %v69 = vshrl.u32 %v68, 7
    %v70 = vsub.s32 0, %v69
    %v71 = vrot.slane %v66, %v70
    %v105 = vunpack.c.l.b16 %v30
    %v106 = vunpack.c.l.b16 %v31
    %v107 = vunpack.c.l.b16 %v32
    %v108 = vunpack.c.l.b16 %v33
    %v109 = vunpack.c.l.b16 %v34
    %v110 = vunpack.c.l.b16 %v35
    %v111 = vunpack.c.l.b16 %v36
    %v112 = vunpack.c.l.b16 %v37
    %v113 = vunpack.c.l.b16 %v38
    %v114 = vunpack.c.l.b16 %v39
    %v115 = vunpack.c.l.b16 %v40
    %v116 = vunpack.c.l.b16 %v41
    %v117 = vunpack.c.l.b16 %v42
    %v118 = vunpack.c.l.b16 %v43
    %v119 = vunpack.c.l.b16 %v44
    %v120 = vunpack.c.l.b16 %v45
    %v121 = vunpack.c.l.b16 %v46
    %v122 = vunpack.c.l.b16 %v47
    %v123 = vunpack.c.l.b16 %v48
    %v124 = vunpack.c.l.b16 %v49
    %v125 = vunpack.c.l.b16 %v50
    %v126 = vunpack.c.l.b16 %v51
    %v127 = vunpack.c.l.b16 %v52
    %v128 = vunpack.c.l.b16 %v53
    %v129 = vunpack.c.l.b16 %v54
    %v130 = vunpack.c.l.b16 %v55
    %v131 = vunpack.c.l.b16 %v56
    %v132 = vunpack.c.l.b16 %v57
    %v133 = vunpack.c.l.b16 %v58
    %v134 = vunpack.c.l.b16 %v59
    %v135 = vunpack.c.l.b16 %v60
    %v136 = vunpack.c.l.b16 %v61
    %v137 = vpack.c.b16 %v106, %v105
    %v138 = vpack.c.b16 %v108, %v107
    %v139 = vpack.c.b16 %v110, %v109
    %v140 = vpack.c.b16 %v112, %v111
    %v141 = vpack.c.b16 %v114, %v113
    %v142 = vpack.c.b16 %v116, %v115
    %v143 = vpack.c.b16 %v118, %v117
    %v144 = vpack.c.b16 %v120, %v119
    %v145 = vpack.c.b16 %v122, %v121
    %v146 = vpack.c.b16 %v124, %v123
    %v147 = vpack.c.b16 %v126, %v125
    %v148 = vpack.c.b16 %v128, %v127
    %v149 = vpack.c.b16 %v130, %v129
    %v150 = vpack.c.b16 %v132, %v131
    %v151 = vpack.c.b16 %v134, %v133
    %v152 = vpack.c.b16 %v136, %v135
    %v157 = vunpack.c.l.b16 %v62
    %v158 = vunpack.c.l.b16 %v63
    %v159 = vunpack.c.l.b16 %v64
    %v160 = vunpack.c.l.b16 %v65
    %v161 = vpack.c.b16 %v158, %v157
    %v162 = vpack.c.b16 %v160, %v159
    %vm165 = vcmask 261120
    %v167 = vsel %vm165, %v137, 0
    %v170 = vsel %vm165, %v138, 0
    %v173 = vsel %vm165, %v139, 0
    %v176 = vsel %vm165, %v140, 0
    %v179 = vsel %vm165, %v141, 0
    %v182 = vsel %vm165, %v142, 0
    %v185 = vsel %vm165, %v143, 0
    %v188 = vsel %vm165, %v144, 0
    %v191 = vsel %vm165, %v145, 0
    %v194 = vsel %vm165, %v146, 0
    %v197 = vsel %vm165, %v147, 0
    %v200 = vsel %vm165, %v148, 0
    %v203 = vsel %vm165, %v149, 0
    %v206 = vsel %vm165, %v150, 0
    %v209 = vsel %vm165, %v151, 0
    %v212 = vsel %vm165, %v152, 0
    %214 = vmatprep.subr.bf16.mxu0 0
    %215 = vmatpush1.bf16.msra.mxu0 0
    %216 = vmatprep.subr.bf16.mxu0 0
    %217 = vmatpush1.bf16.msra.mxu0 0
    %218 = vmatprep.subr.bf16.mxu0 0
    %219 = vmatpush1.bf16.msra.mxu0 0
    %220 = vmatprep.subr.bf16.mxu0 0
    %221 = vmatpush1.bf16.msra.mxu0 0
    %222 = vmatprep.subr.bf16.mxu0 0
    %223 = vmatpush1.bf16.msra.mxu0 0
    %224 = vmatprep.subr.bf16.mxu0 0
    %225 = vmatpush1.bf16.msra.mxu0 0
    %226 = vmatprep.subr.bf16.mxu0 0
    %227 = vmatpush1.bf16.msra.mxu0 %v162
    %228 = vmatprep.subr.bf16.mxu0 0
    %229 = vmatpush1.bf16.msra.mxu0 %v161
    %230 = vmatprep.subr.bf16.mxu0 0
    %231 = vmatpush2.bf16.msra.mxu0 0
    %232 = vmatprep.subr.bf16.mxu0 0
    %233 = vmatpush2.bf16.msra.mxu0 0
    %234 = vmatprep.subr.bf16.mxu0 0
    %235 = vmatpush2.bf16.msra.mxu0 0
    %236 = vmatprep.subr.bf16.mxu0 0
    %237 = vmatpush2.bf16.msra.mxu0 0
    %238 = vmatprep.subr.bf16.mxu0 0
    %239 = vmatpush2.bf16.msra.mxu0 0
    %240 = vmatprep.subr.bf16.mxu0 0
    %241 = vmatpush2.bf16.msra.mxu0 0
    %242 = vmatprep.subr.bf16.mxu0 0
    %243 = vmatpush2.bf16.msra.mxu0 0
    %244 = vmatprep.subr.bf16.mxu0 0
    %245 = vmatpush2.bf16.msra.mxu0 0
    %246 = vmatprep.mubr.bf16.mxu0 0
    %247 = vmatmul.mubr.bf16.gmra.mxu0 %v167
    %v248 = vpop.f32.mrf.mxu0
    %v249 = vadd.f32 %v71, %v248
    %v250 = vpop.f32.mrf.mxu0
    %v251 = vpop.f32.mrf.mxu0
    %v252 = vadd.f32 %v71, %v251
    %v253 = vpop.f32.mrf.mxu0
    %254 = vmatprep.mubr.bf16.mxu0 0
    %255 = vmatmul.mubr.bf16.gmra.mxu0 %v170
    %v256 = vpop.f32.mrf.mxu0
    %v257 = vadd.f32 %v71, %v256
    %v258 = vpop.f32.mrf.mxu0
    %v259 = vpop.f32.mrf.mxu0
    %v260 = vadd.f32 %v71, %v259
    %v261 = vpop.f32.mrf.mxu0
    %262 = vmatprep.mubr.bf16.mxu0 0
    %263 = vmatmul.mubr.bf16.gmra.mxu0 %v173
    %v264 = vpop.f32.mrf.mxu0
    %v265 = vadd.f32 %v71, %v264
    %v266 = vpop.f32.mrf.mxu0
    %v267 = vpop.f32.mrf.mxu0
    %v268 = vadd.f32 %v71, %v267
    %v269 = vpop.f32.mrf.mxu0
    %270 = vmatprep.mubr.bf16.mxu0 0
    %271 = vmatmul.mubr.bf16.gmra.mxu0 %v176
    %v272 = vpop.f32.mrf.mxu0
    %v273 = vadd.f32 %v71, %v272
    %v274 = vpop.f32.mrf.mxu0
    %v275 = vpop.f32.mrf.mxu0
    %v276 = vadd.f32 %v71, %v275
    %v277 = vpop.f32.mrf.mxu0
    %278 = vmatprep.mubr.bf16.mxu0 0
    %279 = vmatmul.mubr.bf16.gmra.mxu0 %v179
    %v280 = vpop.f32.mrf.mxu0
    %v281 = vadd.f32 %v71, %v280
    %v282 = vpop.f32.mrf.mxu0
    %v283 = vpop.f32.mrf.mxu0
    %v284 = vadd.f32 %v71, %v283
    %v285 = vpop.f32.mrf.mxu0
    %286 = vmatprep.mubr.bf16.mxu0 0
    %287 = vmatmul.mubr.bf16.gmra.mxu0 %v182
    %v288 = vpop.f32.mrf.mxu0
    %v289 = vadd.f32 %v71, %v288
    %v290 = vpop.f32.mrf.mxu0
    %v291 = vpop.f32.mrf.mxu0
    %v292 = vadd.f32 %v71, %v291
    %v293 = vpop.f32.mrf.mxu0
    %294 = vmatprep.mubr.bf16.mxu0 0
    %295 = vmatmul.mubr.bf16.gmra.mxu0 %v185
    %v296 = vpop.f32.mrf.mxu0
    %v297 = vadd.f32 %v71, %v296
    %v298 = vpop.f32.mrf.mxu0
    %v299 = vpop.f32.mrf.mxu0
    %v300 = vadd.f32 %v71, %v299
    %v301 = vpop.f32.mrf.mxu0
    %302 = vmatprep.mubr.bf16.mxu0 0
    %303 = vmatmul.mubr.bf16.gmra.mxu0 %v188
    %v304 = vpop.f32.mrf.mxu0
    %v305 = vadd.f32 %v71, %v304
    %v306 = vpop.f32.mrf.mxu0
    %v307 = vpop.f32.mrf.mxu0
    %v308 = vadd.f32 %v71, %v307
    %v309 = vpop.f32.mrf.mxu0
    %310 = vmatprep.mubr.bf16.mxu0 0
    %311 = vmatmul.mubr.bf16.gmra.mxu0 %v191
    %v312 = vpop.f32.mrf.mxu0
    %v313 = vadd.f32 %v71, %v312
    %v314 = vpop.f32.mrf.mxu0
    %v315 = vpop.f32.mrf.mxu0
    %v316 = vadd.f32 %v71, %v315
    %v317 = vpop.f32.mrf.mxu0
    %318 = vmatprep.mubr.bf16.mxu0 0
    %319 = vmatmul.mubr.bf16.gmra.mxu0 %v194
    %v320 = vpop.f32.mrf.mxu0
    %v321 = vadd.f32 %v71, %v320
    %v322 = vpop.f32.mrf.mxu0
    %v323 = vpop.f32.mrf.mxu0
    %v324 = vadd.f32 %v71, %v323
    %v325 = vpop.f32.mrf.mxu0
    %326 = vmatprep.mubr.bf16.mxu0 0
    %327 = vmatmul.mubr.bf16.gmra.mxu0 %v197
    %v328 = vpop.f32.mrf.mxu0
    %v329 = vadd.f32 %v71, %v328
    %v330 = vpop.f32.mrf.mxu0
    %v331 = vpop.f32.mrf.mxu0
    %v332 = vadd.f32 %v71, %v331
    %v333 = vpop.f32.mrf.mxu0
    %334 = vmatprep.mubr.bf16.mxu0 0
    %335 = vmatmul.mubr.bf16.gmra.mxu0 %v200
    %v336 = vpop.f32.mrf.mxu0
    %v337 = vadd.f32 %v71, %v336
    %v338 = vpop.f32.mrf.mxu0
    %v339 = vpop.f32.mrf.mxu0
    %v340 = vadd.f32 %v71, %v339
    %v341 = vpop.f32.mrf.mxu0
    %342 = vmatprep.mubr.bf16.mxu0 0
    %343 = vmatmul.mubr.bf16.gmra.mxu0 %v203
    %v344 = vpop.f32.mrf.mxu0
    %v345 = vadd.f32 %v71, %v344
    %v346 = vpop.f32.mrf.mxu0
    %v347 = vpop.f32.mrf.mxu0
    %v348 = vadd.f32 %v71, %v347
    %v349 = vpop.f32.mrf.mxu0
    %350 = vmatprep.mubr.bf16.mxu0 0
    %351 = vmatmul.mubr.bf16.gmra.mxu0 %v206
    %v352 = vpop.f32.mrf.mxu0
    %v353 = vadd.f32 %v71, %v352
    %v354 = vpop.f32.mrf.mxu0
    %v355 = vpop.f32.mrf.mxu0
    %v356 = vadd.f32 %v71, %v355
    %v357 = vpop.f32.mrf.mxu0
    %358 = vmatprep.mubr.bf16.mxu0 0
    %359 = vmatmul.mubr.bf16.gmra.mxu0 %v209
    %v360 = vpop.f32.mrf.mxu0
    %v361 = vadd.f32 %v71, %v360
    %v362 = vpop.f32.mrf.mxu0
    %v363 = vpop.f32.mrf.mxu0
    %v364 = vadd.f32 %v71, %v363
    %v365 = vpop.f32.mrf.mxu0
    %366 = vmatprep.mubr.bf16.mxu0 0
    %367 = vmatmul.mubr.bf16.gmra.mxu0 %v212
    %v368 = vpop.f32.mrf.mxu0
    %v369 = vadd.f32 %v71, %v368
    %v370 = vpop.f32.mrf.mxu0
    %v371 = vpop.f32.mrf.mxu0
    %v372 = vadd.f32 %v71, %v371
    %v373 = vpop.f32.mrf.mxu0
    %374 = vdwg.mxu0
    %v375 = vmax.f32 %v249, 0.0
    %v376 = vmax.f32 %v252, 0.0
    %v377 = vmax.f32 %v257, 0.0
    %v378 = vmax.f32 %v260, 0.0
    %v379 = vmax.f32 %v265, 0.0
    %v380 = vmax.f32 %v268, 0.0
    %v381 = vmax.f32 %v273, 0.0
    %v382 = vmax.f32 %v276, 0.0
    %v383 = vmax.f32 %v281, 0.0
    %v384 = vmax.f32 %v284, 0.0
    %v385 = vmax.f32 %v289, 0.0
    %v386 = vmax.f32 %v292, 0.0
    %v387 = vmax.f32 %v297, 0.0
    %v388 = vmax.f32 %v300, 0.0
    %v389 = vmax.f32 %v305, 0.0
    %v390 = vmax.f32 %v308, 0.0
    %v391 = vmax.f32 %v313, 0.0
    %v392 = vmax.f32 %v316, 0.0
    %v393 = vmax.f32 %v321, 0.0
    %v394 = vmax.f32 %v324, 0.0
    %v395 = vmax.f32 %v329, 0.0
    %v396 = vmax.f32 %v332, 0.0
    %v397 = vmax.f32 %v337, 0.0
    %v398 = vmax.f32 %v340, 0.0
    %v399 = vmax.f32 %v345, 0.0
    %v400 = vmax.f32 %v348, 0.0
    %v401 = vmax.f32 %v353, 0.0
    %v402 = vmax.f32 %v356, 0.0
    %v403 = vmax.f32 %v361, 0.0
    %v404 = vmax.f32 %v364, 0.0
    %v405 = vmax.f32 %v369, 0.0
    %v406 = vmax.f32 %v372, 0.0
    %v407 = vpack.c.bf16 %v376, %v375
    %v408 = vpack.c.bf16 %v378, %v377
    %v409 = vpack.c.bf16 %v380, %v379
    %v410 = vpack.c.bf16 %v382, %v381
    %v411 = vpack.c.bf16 %v384, %v383
    %v412 = vpack.c.bf16 %v386, %v385
    %v413 = vpack.c.bf16 %v388, %v387
    %v414 = vpack.c.bf16 %v390, %v389
    %v415 = vpack.c.bf16 %v392, %v391
    %v416 = vpack.c.bf16 %v394, %v393
    %v417 = vpack.c.bf16 %v396, %v395
    %v418 = vpack.c.bf16 %v398, %v397
    %v419 = vpack.c.bf16 %v400, %v399
    %v420 = vpack.c.bf16 %v402, %v401
    %v421 = vpack.c.bf16 %v404, %v403
    %v422 = vpack.c.bf16 %v406, %v405
    %v423 = vld [vmem:[%s3] sm:$0xf]
    %v424 = vld [vmem:[%s3 + $0x4] sm:$0xf]
    %v425 = vld [vmem:[%s3 + $0x8] sm:$0xf]
    %v426 = vld [vmem:[%s3 + $0xc] sm:$0xf]
    %v427 = vld [vmem:[%s3 + $0x10] sm:$0xf]
    %v428 = vld [vmem:[%s3 + $0x14] sm:$0xf]
    %v429 = vld [vmem:[%s3 + $0x18] sm:$0xf]
    %v430 = vld [vmem:[%s3 + $0x1c] sm:$0xf]
    %v431 = vld [vmem:[%s4] sm:$0x1]
    %v433 = vlaneseq
    %v434 = vshrl.u32 %v433, 7
    %v435 = vsub.s32 0, %v434
    %v436 = vrot.slane %v431, %v435
    %v446 = vunpack.c.l.b16 %v423
    %v447 = vunpack.c.l.b16 %v424
    %v448 = vunpack.c.l.b16 %v425
    %v449 = vunpack.c.l.b16 %v426
    %v450 = vunpack.c.l.b16 %v427
    %v451 = vunpack.c.l.b16 %v428
    %v452 = vunpack.c.l.b16 %v429
    %v453 = vunpack.c.l.b16 %v430
    %v454 = vpack.c.b16 %v447, %v446
    %v455 = vpack.c.b16 %v449, %v448
    %v456 = vpack.c.b16 %v451, %v450
    %v457 = vpack.c.b16 %v453, %v452
    %vm462 = vcmask 523264
    %v464 = vsel %vm462, %v407, 0
    %v467 = vsel %vm462, %v408, 0
    %v470 = vsel %vm462, %v409, 0
    %v473 = vsel %vm462, %v410, 0
    %v476 = vsel %vm462, %v411, 0
    %v479 = vsel %vm462, %v412, 0
    %v482 = vsel %vm462, %v413, 0
    %v485 = vsel %vm462, %v414, 0
    %v488 = vsel %vm462, %v415, 0
    %v491 = vsel %vm462, %v416, 0
    %v494 = vsel %vm462, %v417, 0
    %v497 = vsel %vm462, %v418, 0
    %v500 = vsel %vm462, %v419, 0
    %v503 = vsel %vm462, %v420, 0
    %v506 = vsel %vm462, %v421, 0
    %v509 = vsel %vm462, %v422, 0
    %511 = vmatprep.subr.bf16.mxu0 0
    %512 = vmatpush1.bf16.msra.mxu0 0
    %513 = vmatprep.subr.bf16.mxu0 0
    %514 = vmatpush1.bf16.msra.mxu0 0
    %515 = vmatprep.subr.bf16.mxu0 0
    %516 = vmatpush1.bf16.msra.mxu0 0
    %517 = vmatprep.subr.bf16.mxu0 0
    %518 = vmatpush1.bf16.msra.mxu0 0
    %519 = vmatprep.subr.bf16.mxu0 0
    %520 = vmatpush1.bf16.msra.mxu0 %v457
    %521 = vmatprep.subr.bf16.mxu0 0
    %522 = vmatpush1.bf16.msra.mxu0 %v456
    %523 = vmatprep.subr.bf16.mxu0 0
    %524 = vmatpush1.bf16.msra.mxu0 %v455
    %525 = vmatprep.subr.bf16.mxu0 0
    %526 = vmatpush1.bf16.msra.mxu0 %v454
    %527 = vmatprep.subr.bf16.mxu0 0
    %528 = vmatpush2.bf16.msra.mxu0 0
    %529 = vmatprep.subr.bf16.mxu0 0
    %530 = vmatpush2.bf16.msra.mxu0 0
    %531 = vmatprep.subr.bf16.mxu0 0
    %532 = vmatpush2.bf16.msra.mxu0 0
    %533 = vmatprep.subr.bf16.mxu0 0
    %534 = vmatpush2.bf16.msra.mxu0 0
    %535 = vmatprep.subr.bf16.mxu0 0
    %536 = vmatpush2.bf16.msra.mxu0 0
    %537 = vmatprep.subr.bf16.mxu0 0
    %538 = vmatpush2.bf16.msra.mxu0 0
    %539 = vmatprep.subr.bf16.mxu0 0
    %540 = vmatpush2.bf16.msra.mxu0 0
    %541 = vmatprep.subr.bf16.mxu0 0
    %542 = vmatpush2.bf16.msra.mxu0 0
    %543 = vmatprep.mubr.bf16.mxu0 0
    %544 = vmatmul.mubr.bf16.gmra.mxu0 %v464
    %v545 = vpop.f32.mrf.mxu0
    %v546 = vadd.f32 %v436, %v545
    %v547 = vpop.f32.mrf.mxu0
    %v548 = vpop.f32.mrf.mxu0
    %v549 = vadd.f32 %v436, %v548
    %v550 = vpop.f32.mrf.mxu0
    %551 = vmatprep.mubr.bf16.mxu0 0
    %552 = vmatmul.mubr.bf16.gmra.mxu0 %v467
    %v553 = vpop.f32.mrf.mxu0
    %v554 = vadd.f32 %v436, %v553
    %v555 = vpop.f32.mrf.mxu0
    %v556 = vpop.f32.mrf.mxu0
    %v557 = vadd.f32 %v436, %v556
    %v558 = vpop.f32.mrf.mxu0
    %559 = vmatprep.mubr.bf16.mxu0 0
    %560 = vmatmul.mubr.bf16.gmra.mxu0 %v470
    %v561 = vpop.f32.mrf.mxu0
    %v562 = vadd.f32 %v436, %v561
    %v563 = vpop.f32.mrf.mxu0
    %v564 = vpop.f32.mrf.mxu0
    %v565 = vadd.f32 %v436, %v564
    %v566 = vpop.f32.mrf.mxu0
    %567 = vmatprep.mubr.bf16.mxu0 0
    %568 = vmatmul.mubr.bf16.gmra.mxu0 %v473
    %v569 = vpop.f32.mrf.mxu0
    %v570 = vadd.f32 %v436, %v569
    %v571 = vpop.f32.mrf.mxu0
    %v572 = vpop.f32.mrf.mxu0
    %v573 = vadd.f32 %v436, %v572
    %v574 = vpop.f32.mrf.mxu0
    %575 = vmatprep.mubr.bf16.mxu0 0
    %576 = vmatmul.mubr.bf16.gmra.mxu0 %v476
    %v577 = vpop.f32.mrf.mxu0
    %v578 = vadd.f32 %v436, %v577
    %v579 = vpop.f32.mrf.mxu0
    %v580 = vpop.f32.mrf.mxu0
    %v581 = vadd.f32 %v436, %v580
    %v582 = vpop.f32.mrf.mxu0
    %583 = vmatprep.mubr.bf16.mxu0 0
    %584 = vmatmul.mubr.bf16.gmra.mxu0 %v479
    %v585 = vpop.f32.mrf.mxu0
    %v586 = vadd.f32 %v436, %v585
    %v587 = vpop.f32.mrf.mxu0
    %v588 = vpop.f32.mrf.mxu0
    %v589 = vadd.f32 %v436, %v588
    %v590 = vpop.f32.mrf.mxu0
    %591 = vmatprep.mubr.bf16.mxu0 0
    %592 = vmatmul.mubr.bf16.gmra.mxu0 %v482
    %v593 = vpop.f32.mrf.mxu0
    %v594 = vadd.f32 %v436, %v593
    %v595 = vpop.f32.mrf.mxu0
    %v596 = vpop.f32.mrf.mxu0
    %v597 = vadd.f32 %v436, %v596
    %v598 = vpop.f32.mrf.mxu0
    %599 = vmatprep.mubr.bf16.mxu0 0
    %600 = vmatmul.mubr.bf16.gmra.mxu0 %v485
    %v601 = vpop.f32.mrf.mxu0
    %v602 = vadd.f32 %v436, %v601
    %v603 = vpop.f32.mrf.mxu0
    %v604 = vpop.f32.mrf.mxu0
    %v605 = vadd.f32 %v436, %v604
    %v606 = vpop.f32.mrf.mxu0
    %607 = vmatprep.mubr.bf16.mxu0 0
    %608 = vmatmul.mubr.bf16.gmra.mxu0 %v488
    %v609 = vpop.f32.mrf.mxu0
    %v610 = vadd.f32 %v436, %v609
    %v611 = vpop.f32.mrf.mxu0
    %v612 = vpop.f32.mrf.mxu0
    %v613 = vadd.f32 %v436, %v612
    %v614 = vpop.f32.mrf.mxu0
    %615 = vmatprep.mubr.bf16.mxu0 0
    %616 = vmatmul.mubr.bf16.gmra.mxu0 %v491
    %v617 = vpop.f32.mrf.mxu0
    %v618 = vadd.f32 %v436, %v617
    %v619 = vpop.f32.mrf.mxu0
    %v620 = vpop.f32.mrf.mxu0
    %v621 = vadd.f32 %v436, %v620
    %v622 = vpop.f32.mrf.mxu0
    %623 = vmatprep.mubr.bf16.mxu0 0
    %624 = vmatmul.mubr.bf16.gmra.mxu0 %v494
    %v625 = vpop.f32.mrf.mxu0
    %v626 = vadd.f32 %v436, %v625
    %v627 = vpop.f32.mrf.mxu0
    %v628 = vpop.f32.mrf.mxu0
    %v629 = vadd.f32 %v436, %v628
    %v630 = vpop.f32.mrf.mxu0
    %631 = vmatprep.mubr.bf16.mxu0 0
    %632 = vmatmul.mubr.bf16.gmra.mxu0 %v497
    %v633 = vpop.f32.mrf.mxu0
    %v634 = vadd.f32 %v436, %v633
    %v635 = vpop.f32.mrf.mxu0
    %v636 = vpop.f32.mrf.mxu0
    %v637 = vadd.f32 %v436, %v636
    %v638 = vpop.f32.mrf.mxu0
    %639 = vmatprep.mubr.bf16.mxu0 0
    %640 = vmatmul.mubr.bf16.gmra.mxu0 %v500
    %v641 = vpop.f32.mrf.mxu0
    %v642 = vadd.f32 %v436, %v641
    %v643 = vpop.f32.mrf.mxu0
    %v644 = vpop.f32.mrf.mxu0
    %v645 = vadd.f32 %v436, %v644
    %v646 = vpop.f32.mrf.mxu0
    %647 = vmatprep.mubr.bf16.mxu0 0
    %648 = vmatmul.mubr.bf16.gmra.mxu0 %v503
    %v649 = vpop.f32.mrf.mxu0
    %v650 = vadd.f32 %v436, %v649
    %v651 = vpop.f32.mrf.mxu0
    %v652 = vpop.f32.mrf.mxu0
    %v653 = vadd.f32 %v436, %v652
    %v654 = vpop.f32.mrf.mxu0
    %655 = vmatprep.mubr.bf16.mxu0 0
    %656 = vmatmul.mubr.bf16.gmra.mxu0 %v506
    %v657 = vpop.f32.mrf.mxu0
    %v658 = vadd.f32 %v436, %v657
    %v659 = vpop.f32.mrf.mxu0
    %v660 = vpop.f32.mrf.mxu0
    %v661 = vadd.f32 %v436, %v660
    %v662 = vpop.f32.mrf.mxu0
    %663 = vmatprep.mubr.bf16.mxu0 0
    %664 = vmatmul.mubr.bf16.gmra.mxu0 %v509
    %v665 = vpop.f32.mrf.mxu0
    %v666 = vadd.f32 %v436, %v665
    %v667 = vpop.f32.mrf.mxu0
    %v668 = vpop.f32.mrf.mxu0
    %v669 = vadd.f32 %v436, %v668
    %v670 = vpop.f32.mrf.mxu0
    %671 = vdwg.mxu0
    %v672 = vmax.f32 %v546, 0.0
    %v673 = vmax.f32 %v549, 0.0
    %v674 = vmax.f32 %v554, 0.0
    %v675 = vmax.f32 %v557, 0.0
    %v676 = vmax.f32 %v562, 0.0
    %v677 = vmax.f32 %v565, 0.0
    %v678 = vmax.f32 %v570, 0.0
    %v679 = vmax.f32 %v573, 0.0
    %v680 = vmax.f32 %v578, 0.0
    %v681 = vmax.f32 %v581, 0.0
    %v682 = vmax.f32 %v586, 0.0
    %v683 = vmax.f32 %v589, 0.0
    %v684 = vmax.f32 %v594, 0.0
    %v685 = vmax.f32 %v597, 0.0
    %v686 = vmax.f32 %v602, 0.0
    %v687 = vmax.f32 %v605, 0.0
    %v688 = vmax.f32 %v610, 0.0
    %v689 = vmax.f32 %v613, 0.0
    %v690 = vmax.f32 %v618, 0.0
    %v691 = vmax.f32 %v621, 0.0
    %v692 = vmax.f32 %v626, 0.0
    %v693 = vmax.f32 %v629, 0.0
    %v694 = vmax.f32 %v634, 0.0
    %v695 = vmax.f32 %v637, 0.0
    %v696 = vmax.f32 %v642, 0.0
    %v697 = vmax.f32 %v645, 0.0
    %v698 = vmax.f32 %v650, 0.0
    %v699 = vmax.f32 %v653, 0.0
    %v700 = vmax.f32 %v658, 0.0
    %v701 = vmax.f32 %v661, 0.0
    %v702 = vmax.f32 %v666, 0.0
    %v703 = vmax.f32 %v669, 0.0
    %v704 = vld [vmem:[%s5] sm:$0x1]
    %v706 = vlaneseq
    %v707 = vshrl.u32 %v706, 7
    %v708 = vsub.s32 0, %v707
    %v709 = vrot.slane %v704, %v708
    %v711 = vmul.f32 %v672, %v709
    %v712 = vmul.f32 %v673, %v709
    %v713 = vmul.f32 %v674, %v709
    %v714 = vmul.f32 %v675, %v709
    %v715 = vmul.f32 %v676, %v709
    %v716 = vmul.f32 %v677, %v709
    %v717 = vmul.f32 %v678, %v709
    %v718 = vmul.f32 %v679, %v709
    %v719 = vmul.f32 %v680, %v709
    %v720 = vmul.f32 %v681, %v709
    %v721 = vmul.f32 %v682, %v709
    %v722 = vmul.f32 %v683, %v709
    %v723 = vmul.f32 %v684, %v709
    %v724 = vmul.f32 %v685, %v709
    %v725 = vmul.f32 %v686, %v709
    %v726 = vmul.f32 %v687, %v709
    %v727 = vmul.f32 %v688, %v709
    %v728 = vmul.f32 %v689, %v709
    %v729 = vmul.f32 %v690, %v709
    %v730 = vmul.f32 %v691, %v709
    %v731 = vmul.f32 %v692, %v709
    %v732 = vmul.f32 %v693, %v709
    %v733 = vmul.f32 %v694, %v709
    %v734 = vmul.f32 %v695, %v709
    %v735 = vmul.f32 %v696, %v709
    %v736 = vmul.f32 %v697, %v709
    %v737 = vmul.f32 %v698, %v709
    %v738 = vmul.f32 %v699, %v709
    %v739 = vmul.f32 %v700, %v709
    %v740 = vmul.f32 %v701, %v709
    %v741 = vmul.f32 %v702, %v709
    %v742 = vmul.f32 %v703, %v709
    %vm743 = vcmask 130048
    %v744 = vsel %vm743, %v711, 0.0
    %745 = vadd.xlane.f32.xlu0 %v744
    %v746 = vpop.xlane.xlu0 %745
    %v747 = vsel %vm743, %v712, 0.0
    %748 = vadd.xlane.f32.xlu0 %v747
    %v749 = vpop.xlane.xlu0 %748
    %v750 = vsel %vm743, %v713, 0.0
    %751 = vadd.xlane.f32.xlu0 %v750
    %v752 = vpop.xlane.xlu0 %751
    %v753 = vsel %vm743, %v714, 0.0
    %754 = vadd.xlane.f32.xlu0 %v753
    %v755 = vpop.xlane.xlu0 %754
    %v756 = vsel %vm743, %v715, 0.0
    %757 = vadd.xlane.f32.xlu0 %v756
    %v758 = vpop.xlane.xlu0 %757
    %v759 = vsel %vm743, %v716, 0.0
    %760 = vadd.xlane.f32.xlu0 %v759
    %v761 = vpop.xlane.xlu0 %760
    %v762 = vsel %vm743, %v717, 0.0
    %763 = vadd.xlane.f32.xlu0 %v762
    %v764 = vpop.xlane.xlu0 %763
    %v765 = vsel %vm743, %v718, 0.0
    %766 = vadd.xlane.f32.xlu0 %v765
    %v767 = vpop.xlane.xlu0 %766
    %v768 = vsel %vm743, %v719, 0.0
    %769 = vadd.xlane.f32.xlu0 %v768
    %v770 = vpop.xlane.xlu0 %769
    %v771 = vsel %vm743, %v720, 0.0
    %772 = vadd.xlane.f32.xlu0 %v771
    %v773 = vpop.xlane.xlu0 %772
    %v774 = vsel %vm743, %v721, 0.0
    %775 = vadd.xlane.f32.xlu0 %v774
    %v776 = vpop.xlane.xlu0 %775
    %v777 = vsel %vm743, %v722, 0.0
    %778 = vadd.xlane.f32.xlu0 %v777
    %v779 = vpop.xlane.xlu0 %778
    %v780 = vsel %vm743, %v723, 0.0
    %781 = vadd.xlane.f32.xlu0 %v780
    %v782 = vpop.xlane.xlu0 %781
    %v783 = vsel %vm743, %v724, 0.0
    %784 = vadd.xlane.f32.xlu0 %v783
    %v785 = vpop.xlane.xlu0 %784
    %v786 = vsel %vm743, %v725, 0.0
    %787 = vadd.xlane.f32.xlu0 %v786
    %v788 = vpop.xlane.xlu0 %787
    %v789 = vsel %vm743, %v726, 0.0
    %790 = vadd.xlane.f32.xlu0 %v789
    %v791 = vpop.xlane.xlu0 %790
    %v792 = vsel %vm743, %v727, 0.0
    %793 = vadd.xlane.f32.xlu0 %v792
    %v794 = vpop.xlane.xlu0 %793
    %v795 = vsel %vm743, %v728, 0.0
    %796 = vadd.xlane.f32.xlu0 %v795
    %v797 = vpop.xlane.xlu0 %796
    %v798 = vsel %vm743, %v729, 0.0
    %799 = vadd.xlane.f32.xlu0 %v798
    %v800 = vpop.xlane.xlu0 %799
    %v801 = vsel %vm743, %v730, 0.0
    %802 = vadd.xlane.f32.xlu0 %v801
    %v803 = vpop.xlane.xlu0 %802
    %v804 = vsel %vm743, %v731, 0.0
    %805 = vadd.xlane.f32.xlu0 %v804
    %v806 = vpop.xlane.xlu0 %805
    %v807 = vsel %vm743, %v732, 0.0
    %808 = vadd.xlane.f32.xlu0 %v807
    %v809 = vpop.xlane.xlu0 %808
    %v810 = vsel %vm743, %v733, 0.0
    %811 = vadd.xlane.f32.xlu0 %v810
    %v812 = vpop.xlane.xlu0 %811
    %v813 = vsel %vm743, %v734, 0.0
    %814 = vadd.xlane.f32.xlu0 %v813
    %v815 = vpop.xlane.xlu0 %814
    %v816 = vsel %vm743, %v735, 0.0
    %817 = vadd.xlane.f32.xlu0 %v816
    %v818 = vpop.xlane.xlu0 %817
    %v819 = vsel %vm743, %v736, 0.0
    %820 = vadd.xlane.f32.xlu0 %v819
    %v821 = vpop.xlane.xlu0 %820
    %v822 = vsel %vm743, %v737, 0.0
    %823 = vadd.xlane.f32.xlu0 %v822
    %v824 = vpop.xlane.xlu0 %823
    %v825 = vsel %vm743, %v738, 0.0
    %826 = vadd.xlane.f32.xlu0 %v825
    %v827 = vpop.xlane.xlu0 %826
    %v828 = vsel %vm743, %v739, 0.0
    %829 = vadd.xlane.f32.xlu0 %v828
    %v830 = vpop.xlane.xlu0 %829
    %v831 = vsel %vm743, %v740, 0.0
    %832 = vadd.xlane.f32.xlu0 %v831
    %v833 = vpop.xlane.xlu0 %832
    %v834 = vsel %vm743, %v741, 0.0
    %835 = vadd.xlane.f32.xlu0 %v834
    %v836 = vpop.xlane.xlu0 %835
    %v837 = vsel %vm743, %v742, 0.0
    %838 = vadd.xlane.f32.xlu0 %v837
    %v839 = vpop.xlane.xlu0 %838
    %v840 = vld [vmem:[#allocation2] sm:$0x1]
    %v842 = vlaneseq
    %v843 = vshrl.u32 %v842, 7
    %v844 = vsub.s32 0, %v843
    %v845 = vrot.slane %v840, %v844
    %v847 = vadd.f32 %v746, %v845
    %v848 = vadd.f32 %v749, %v845
    %v849 = vadd.f32 %v752, %v845
    %v850 = vadd.f32 %v755, %v845
    %v851 = vadd.f32 %v758, %v845
    %v852 = vadd.f32 %v761, %v845
    %v853 = vadd.f32 %v764, %v845
    %v854 = vadd.f32 %v767, %v845
    %v855 = vadd.f32 %v770, %v845
    %v856 = vadd.f32 %v773, %v845
    %v857 = vadd.f32 %v776, %v845
    %v858 = vadd.f32 %v779, %v845
    %v859 = vadd.f32 %v782, %v845
    %v860 = vadd.f32 %v785, %v845
    %v861 = vadd.f32 %v788, %v845
    %v862 = vadd.f32 %v791, %v845
    %v863 = vadd.f32 %v794, %v845
    %v864 = vadd.f32 %v797, %v845
    %v865 = vadd.f32 %v800, %v845
    %v866 = vadd.f32 %v803, %v845
    %v867 = vadd.f32 %v806, %v845
    %v868 = vadd.f32 %v809, %v845
    %v869 = vadd.f32 %v812, %v845
    %v870 = vadd.f32 %v815, %v845
    %v871 = vadd.f32 %v818, %v845
    %v872 = vadd.f32 %v821, %v845
    %v873 = vadd.f32 %v824, %v845
    %v874 = vadd.f32 %v827, %v845
    %v875 = vadd.f32 %v830, %v845
    %v876 = vadd.f32 %v833, %v845
    %v877 = vadd.f32 %v836, %v845
    %v878 = vadd.f32 %v839, %v845
    %v879 = vsub.f32 0.0, %v847
    %v880 = vsub.f32 0.0, %v848
    %v881 = vsub.f32 0.0, %v849
    %v882 = vsub.f32 0.0, %v850
    %v883 = vsub.f32 0.0, %v851
    %v884 = vsub.f32 0.0, %v852
    %v885 = vsub.f32 0.0, %v853
    %v886 = vsub.f32 0.0, %v854
    %v887 = vsub.f32 0.0, %v855
    %v888 = vsub.f32 0.0, %v856
    %v889 = vsub.f32 0.0, %v857
    %v890 = vsub.f32 0.0, %v858
    %v891 = vsub.f32 0.0, %v859
    %v892 = vsub.f32 0.0, %v860
    %v893 = vsub.f32 0.0, %v861
    %v894 = vsub.f32 0.0, %v862
    %v895 = vsub.f32 0.0, %v863
    %v896 = vsub.f32 0.0, %v864
    %v897 = vsub.f32 0.0, %v865
    %v898 = vsub.f32 0.0, %v866
    %v899 = vsub.f32 0.0, %v867
    %v900 = vsub.f32 0.0, %v868
    %v901 = vsub.f32 0.0, %v869
    %v902 = vsub.f32 0.0, %v870
    %v903 = vsub.f32 0.0, %v871
    %v904 = vsub.f32 0.0, %v872
    %v905 = vsub.f32 0.0, %v873
    %v906 = vsub.f32 0.0, %v874
    %v907 = vsub.f32 0.0, %v875
    %v908 = vsub.f32 0.0, %v876
    %v909 = vsub.f32 0.0, %v877
    %v910 = vsub.f32 0.0, %v878
    %v911 = vmul.f32 %v879, 1.442695
    %v912 = vpow.pop %v911
    %v913 = vmul.f32 %v880, 1.442695
    %v914 = vpow.pop %v913
    %v915 = vmul.f32 %v881, 1.442695
    %v916 = vpow.pop %v915
    %v917 = vmul.f32 %v882, 1.442695
    %v918 = vpow.pop %v917
    %v919 = vmul.f32 %v883, 1.442695
    %v920 = vpow.pop %v919
    %v921 = vmul.f32 %v884, 1.442695
    %v922 = vpow.pop %v921
    %v923 = vmul.f32 %v885, 1.442695
    %v924 = vpow.pop %v923
    %v925 = vmul.f32 %v886, 1.442695
    %v926 = vpow.pop %v925
    %v927 = vmul.f32 %v887, 1.442695
    %v928 = vpow.pop %v927
    %v929 = vmul.f32 %v888, 1.442695
    %v930 = vpow.pop %v929
    %v931 = vmul.f32 %v889, 1.442695
    %v932 = vpow.pop %v931
    %v933 = vmul.f32 %v890, 1.442695
    %v934 = vpow.pop %v933
    %v935 = vmul.f32 %v891, 1.442695
    %v936 = vpow.pop %v935
    %v937 = vmul.f32 %v892, 1.442695
    %v938 = vpow.pop %v937
    %v939 = vmul.f32 %v893, 1.442695
    %v940 = vpow.pop %v939
    %v941 = vmul.f32 %v894, 1.442695
    %v942 = vpow.pop %v941
    %v943 = vmul.f32 %v895, 1.442695
    %v944 = vpow.pop %v943
    %v945 = vmul.f32 %v896, 1.442695
    %v946 = vpow.pop %v945
    %v947 = vmul.f32 %v897, 1.442695
    %v948 = vpow.pop %v947
    %v949 = vmul.f32 %v898, 1.442695
    %v950 = vpow.pop %v949
    %v951 = vmul.f32 %v899, 1.442695
    %v952 = vpow.pop %v951
    %v953 = vmul.f32 %v900, 1.442695
    %v954 = vpow.pop %v953
    %v955 = vmul.f32 %v901, 1.442695
    %v956 = vpow.pop %v955
    %v957 = vmul.f32 %v902, 1.442695
    %v958 = vpow.pop %v957
    %v959 = vmul.f32 %v903, 1.442695
    %v960 = vpow.pop %v959
    %v961 = vmul.f32 %v904, 1.442695
    %v962 = vpow.pop %v961
    %v963 = vmul.f32 %v905, 1.442695
    %v964 = vpow.pop %v963
    %v965 = vmul.f32 %v906, 1.442695
    %v966 = vpow.pop %v965
    %v967 = vmul.f32 %v907, 1.442695
    %v968 = vpow.pop %v967
    %v969 = vmul.f32 %v908, 1.442695
    %v970 = vpow.pop %v969
    %v971 = vmul.f32 %v909, 1.442695
    %v972 = vpow.pop %v971
    %v973 = vmul.f32 %v910, 1.442695
    %v974 = vpow.pop %v973
    %v975 = vadd.f32 %v912, 1.0
    %v976 = vadd.f32 %v914, 1.0
    %v977 = vadd.f32 %v916, 1.0
    %v978 = vadd.f32 %v918, 1.0
    %v979 = vadd.f32 %v920, 1.0
    %v980 = vadd.f32 %v922, 1.0
    %v981 = vadd.f32 %v924, 1.0
    %v982 = vadd.f32 %v926, 1.0
    %v983 = vadd.f32 %v928, 1.0
    %v984 = vadd.f32 %v930, 1.0
    %v985 = vadd.f32 %v932, 1.0
    %v986 = vadd.f32 %v934, 1.0
    %v987 = vadd.f32 %v936, 1.0
    %v988 = vadd.f32 %v938, 1.0
    %v989 = vadd.f32 %v940, 1.0
    %v990 = vadd.f32 %v942, 1.0
    %v991 = vadd.f32 %v944, 1.0
    %v992 = vadd.f32 %v946, 1.0
    %v993 = vadd.f32 %v948, 1.0
    %v994 = vadd.f32 %v950, 1.0
    %v995 = vadd.f32 %v952, 1.0
    %v996 = vadd.f32 %v954, 1.0
    %v997 = vadd.f32 %v956, 1.0
    %v998 = vadd.f32 %v958, 1.0
    %v999 = vadd.f32 %v960, 1.0
    %v1000 = vadd.f32 %v962, 1.0
    %v1001 = vadd.f32 %v964, 1.0
    %v1002 = vadd.f32 %v966, 1.0
    %v1003 = vadd.f32 %v968, 1.0
    %v1004 = vadd.f32 %v970, 1.0
    %v1005 = vadd.f32 %v972, 1.0
    %v1006 = vadd.f32 %v974, 1.0
    %v1007 = vrcp.pop %v975
    %v1008 = vmul.f32 1.0, %v1007
    %v1009 = vrcp.pop %v976
    %v1010 = vmul.f32 1.0, %v1009
    %v1011 = vrcp.pop %v977
    %v1012 = vmul.f32 1.0, %v1011
    %v1013 = vrcp.pop %v978
    %v1014 = vmul.f32 1.0, %v1013
    %v1015 = vrcp.pop %v979
    %v1016 = vmul.f32 1.0, %v1015
    %v1017 = vrcp.pop %v980
    %v1018 = vmul.f32 1.0, %v1017
    %v1019 = vrcp.pop %v981
    %v1020 = vmul.f32 1.0, %v1019
    %v1021 = vrcp.pop %v982
    %v1022 = vmul.f32 1.0, %v1021
    %v1023 = vrcp.pop %v983
    %v1024 = vmul.f32 1.0, %v1023
    %v1025 = vrcp.pop %v984
    %v1026 = vmul.f32 1.0, %v1025
    %v1027 = vrcp.pop %v985
    %v1028 = vmul.f32 1.0, %v1027
    %v1029 = vrcp.pop %v986
    %v1030 = vmul.f32 1.0, %v1029
    %v1031 = vrcp.pop %v987
    %v1032 = vmul.f32 1.0, %v1031
    %v1033 = vrcp.pop %v988
    %v1034 = vmul.f32 1.0, %v1033
    %v1035 = vrcp.pop %v989
    %v1036 = vmul.f32 1.0, %v1035
    %v1037 = vrcp.pop %v990
    %v1038 = vmul.f32 1.0, %v1037
    %v1039 = vrcp.pop %v991
    %v1040 = vmul.f32 1.0, %v1039
    %v1041 = vrcp.pop %v992
    %v1042 = vmul.f32 1.0, %v1041
    %v1043 = vrcp.pop %v993
    %v1044 = vmul.f32 1.0, %v1043
    %v1045 = vrcp.pop %v994
    %v1046 = vmul.f32 1.0, %v1045
    %v1047 = vrcp.pop %v995
    %v1048 = vmul.f32 1.0, %v1047
    %v1049 = vrcp.pop %v996
    %v1050 = vmul.f32 1.0, %v1049
    %v1051 = vrcp.pop %v997
    %v1052 = vmul.f32 1.0, %v1051
    %v1053 = vrcp.pop %v998
    %v1054 = vmul.f32 1.0, %v1053
    %v1055 = vrcp.pop %v999
    %v1056 = vmul.f32 1.0, %v1055
    %v1057 = vrcp.pop %v1000
    %v1058 = vmul.f32 1.0, %v1057
    %v1059 = vrcp.pop %v1001
    %v1060 = vmul.f32 1.0, %v1059
    %v1061 = vrcp.pop %v1002
    %v1062 = vmul.f32 1.0, %v1061
    %v1063 = vrcp.pop %v1003
    %v1064 = vmul.f32 1.0, %v1063
    %v1065 = vrcp.pop %v1004
    %v1066 = vmul.f32 1.0, %v1065
    %v1067 = vrcp.pop %v1005
    %v1068 = vmul.f32 1.0, %v1067
    %v1069 = vrcp.pop %v1006
    %v1070 = vmul.f32 1.0, %v1069
    %1103 = vset.pattern.permute.xlu0 0
    %1104 = vperm.xlu0 %1103, %v1008
    %v1105 = vpop.permute.xlu0 %1104
    %1106 = vset.pattern.permute.xlu0 0
    %1107 = vperm.xlu0 %1106, %v1010
    %v1108 = vpop.permute.xlu0 %1107
    %1109 = vset.pattern.permute.xlu0 0
    %1110 = vperm.xlu0 %1109, %v1012
    %v1111 = vpop.permute.xlu0 %1110
    %1112 = vset.pattern.permute.xlu0 0
    %1113 = vperm.xlu0 %1112, %v1014
    %v1114 = vpop.permute.xlu0 %1113
    %1115 = vset.pattern.permute.xlu0 0
    %1116 = vperm.xlu0 %1115, %v1016
    %v1117 = vpop.permute.xlu0 %1116
    %1118 = vset.pattern.permute.xlu0 0
    %1119 = vperm.xlu0 %1118, %v1018
    %v1120 = vpop.permute.xlu0 %1119
    %1121 = vset.pattern.permute.xlu0 0
    %1122 = vperm.xlu0 %1121, %v1020
    %v1123 = vpop.permute.xlu0 %1122
    %1124 = vset.pattern.permute.xlu0 0
    %1125 = vperm.xlu0 %1124, %v1022
    %v1126 = vpop.permute.xlu0 %1125
    %1127 = vset.pattern.permute.xlu0 0
    %1128 = vperm.xlu0 %1127, %v1024
    %v1129 = vpop.permute.xlu0 %1128
    %1130 = vset.pattern.permute.xlu0 0
    %1131 = vperm.xlu0 %1130, %v1026
    %v1132 = vpop.permute.xlu0 %1131
    %1133 = vset.pattern.permute.xlu0 0
    %1134 = vperm.xlu0 %1133, %v1028
    %v1135 = vpop.permute.xlu0 %1134
    %1136 = vset.pattern.permute.xlu0 0
    %1137 = vperm.xlu0 %1136, %v1030
    %v1138 = vpop.permute.xlu0 %1137
    %1139 = vset.pattern.permute.xlu0 0
    %1140 = vperm.xlu0 %1139, %v1032
    %v1141 = vpop.permute.xlu0 %1140
    %1142 = vset.pattern.permute.xlu0 0
    %1143 = vperm.xlu0 %1142, %v1034
    %v1144 = vpop.permute.xlu0 %1143
    %1145 = vset.pattern.permute.xlu0 0
    %1146 = vperm.xlu0 %1145, %v1036
    %v1147 = vpop.permute.xlu0 %1146
    %1148 = vset.pattern.permute.xlu0 0
    %1149 = vperm.xlu0 %1148, %v1038
    %v1150 = vpop.permute.xlu0 %1149
    %1151 = vset.pattern.permute.xlu0 0
    %1152 = vperm.xlu0 %1151, %v1040
    %v1153 = vpop.permute.xlu0 %1152
    %1154 = vset.pattern.permute.xlu0 0
    %1155 = vperm.xlu0 %1154, %v1042
    %v1156 = vpop.permute.xlu0 %1155
    %1157 = vset.pattern.permute.xlu0 0
    %1158 = vperm.xlu0 %1157, %v1044
    %v1159 = vpop.permute.xlu0 %1158
    %1160 = vset.pattern.permute.xlu0 0
    %1161 = vperm.xlu0 %1160, %v1046
    %v1162 = vpop.permute.xlu0 %1161
    %1163 = vset.pattern.permute.xlu0 0
    %1164 = vperm.xlu0 %1163, %v1048
    %v1165 = vpop.permute.xlu0 %1164
    %1166 = vset.pattern.permute.xlu0 0
    %1167 = vperm.xlu0 %1166, %v1050
    %v1168 = vpop.permute.xlu0 %1167
    %1169 = vset.pattern.permute.xlu0 0
    %1170 = vperm.xlu0 %1169, %v1052
    %v1171 = vpop.permute.xlu0 %1170
    %1172 = vset.pattern.permute.xlu0 0
    %1173 = vperm.xlu0 %1172, %v1054
    %v1174 = vpop.permute.xlu0 %1173
    %1175 = vset.pattern.permute.xlu0 0
    %1176 = vperm.xlu0 %1175, %v1056
    %v1177 = vpop.permute.xlu0 %1176
    %1178 = vset.pattern.permute.xlu0 0
    %1179 = vperm.xlu0 %1178, %v1058
    %v1180 = vpop.permute.xlu0 %1179
    %1181 = vset.pattern.permute.xlu0 0
    %1182 = vperm.xlu0 %1181, %v1060
    %v1183 = vpop.permute.xlu0 %1182
    %1184 = vset.pattern.permute.xlu0 0
    %1185 = vperm.xlu0 %1184, %v1062
    %v1186 = vpop.permute.xlu0 %1185
    %1187 = vset.pattern.permute.xlu0 0
    %1188 = vperm.xlu0 %1187, %v1064
    %v1189 = vpop.permute.xlu0 %1188
    %1190 = vset.pattern.permute.xlu0 0
    %1191 = vperm.xlu0 %1190, %v1066
    %v1192 = vpop.permute.xlu0 %1191
    %1193 = vset.pattern.permute.xlu0 0
    %1194 = vperm.xlu0 %1193, %v1068
    %v1195 = vpop.permute.xlu0 %1194
    %1196 = vset.pattern.permute.xlu0 0
    %1197 = vperm.xlu0 %1196, %v1070
    %v1198 = vpop.permute.xlu0 %1197
    %v1199 = vlaneseq
    %v1200 = vand.u32 %v1199, 127
    %v1201 = vlaneseq
    %v1202 = vshrl.u32 %v1201, 7
    %v1203 = vsub.s32 %v1200, %v1202
    %v1204 = vrot.slane %v1105, %v1203
    %v1205 = vadd.s32 %v1200, 4294967288
    %v1206 = vlaneseq
    %v1207 = vshrl.u32 %v1206, 7
    %v1208 = vsub.s32 %v1205, %v1207
    %v1209 = vrot.slane %v1108, %v1208
    %vm1210 = vcmask 130112
    %v1211 = vsel %vm1210, %v1209, %v1204
    %v1212 = vadd.s32 %v1200, 4294967280
    %v1213 = vlaneseq
    %v1214 = vshrl.u32 %v1213, 7
    %v1215 = vsub.s32 %v1212, %v1214
    %v1216 = vrot.slane %v1111, %v1215
    %vm1217 = vcmask 195712
    %v1218 = vsel %vm1217, %v1216, %v1211
    %v1219 = vadd.s32 %v1200, 4294967272
    %v1220 = vlaneseq
    %v1221 = vshrl.u32 %v1220, 7
    %v1222 = vsub.s32 %v1219, %v1221
    %v1223 = vrot.slane %v1114, %v1222
    %vm1224 = vcmask 261312
    %v1225 = vsel %vm1224, %v1223, %v1218
    %v1226 = vadd.s32 %v1200, 4294967264
    %v1227 = vlaneseq
    %v1228 = vshrl.u32 %v1227, 7
    %v1229 = vsub.s32 %v1226, %v1228
    %v1230 = vrot.slane %v1117, %v1229
    %vm1231 = vcmask 326912
    %v1232 = vsel %vm1231, %v1230, %v1225
    %v1233 = vadd.s32 %v1200, 4294967256
    %v1234 = vlaneseq
    %v1235 = vshrl.u32 %v1234, 7
    %v1236 = vsub.s32 %v1233, %v1235
    %v1237 = vrot.slane %v1120, %v1236
    %vm1238 = vcmask 392512
    %v1239 = vsel %vm1238, %v1237, %v1232
    %v1240 = vadd.s32 %v1200, 4294967248
    %v1241 = vlaneseq
    %v1242 = vshrl.u32 %v1241, 7
    %v1243 = vsub.s32 %v1240, %v1242
    %v1244 = vrot.slane %v1123, %v1243
    %vm1245 = vcmask 458112
    %v1246 = vsel %vm1245, %v1244, %v1239
    %v1247 = vadd.s32 %v1200, 4294967240
    %v1248 = vlaneseq
    %v1249 = vshrl.u32 %v1248, 7
    %v1250 = vsub.s32 %v1247, %v1249
    %v1251 = vrot.slane %v1126, %v1250
    %vm1252 = vcmask 523712
    %v1253 = vsel %vm1252, %v1251, %v1246
    %v1254 = vadd.s32 %v1200, 4294967232
    %v1255 = vlaneseq
    %v1256 = vshrl.u32 %v1255, 7
    %v1257 = vsub.s32 %v1254, %v1256
    %v1258 = vrot.slane %v1129, %v1257
    %vm1259 = vcmask 589312
    %v1260 = vsel %vm1259, %v1258, %v1253
    %v1261 = vadd.s32 %v1200, 4294967224
    %v1262 = vlaneseq
    %v1263 = vshrl.u32 %v1262, 7
    %v1264 = vsub.s32 %v1261, %v1263
    %v1265 = vrot.slane %v1132, %v1264
    %vm1266 = vcmask 654912
    %v1267 = vsel %vm1266, %v1265, %v1260
    %v1268 = vadd.s32 %v1200, 4294967216
    %v1269 = vlaneseq
    %v1270 = vshrl.u32 %v1269, 7
    %v1271 = vsub.s32 %v1268, %v1270
    %v1272 = vrot.slane %v1135, %v1271
    %vm1273 = vcmask 720512
    %v1274 = vsel %vm1273, %v1272, %v1267
    %v1275 = vadd.s32 %v1200, 4294967208
    %v1276 = vlaneseq
    %v1277 = vshrl.u32 %v1276, 7
    %v1278 = vsub.s32 %v1275, %v1277
    %v1279 = vrot.slane %v1138, %v1278
    %vm1280 = vcmask 786112
    %v1281 = vsel %vm1280, %v1279, %v1274
    %v1282 = vadd.s32 %v1200, 4294967200
    %v1283 = vlaneseq
    %v1284 = vshrl.u32 %v1283, 7
    %v1285 = vsub.s32 %v1282, %v1284
    %v1286 = vrot.slane %v1141, %v1285
    %vm1287 = vcmask 851712
    %v1288 = vsel %vm1287, %v1286, %v1281
    %v1289 = vadd.s32 %v1200, 4294967192
    %v1290 = vlaneseq
    %v1291 = vshrl.u32 %v1290, 7
    %v1292 = vsub.s32 %v1289, %v1291
    %v1293 = vrot.slane %v1144, %v1292
    %vm1294 = vcmask 917312
    %v1295 = vsel %vm1294, %v1293, %v1288
    %v1296 = vadd.s32 %v1200, 4294967184
    %v1297 = vlaneseq
    %v1298 = vshrl.u32 %v1297, 7
    %v1299 = vsub.s32 %v1296, %v1298
    %v1300 = vrot.slane %v1147, %v1299
    %vm1301 = vcmask 982912
    %v1302 = vsel %vm1301, %v1300, %v1295
    %v1303 = vadd.s32 %v1200, 4294967176
    %v1304 = vlaneseq
    %v1305 = vshrl.u32 %v1304, 7
    %v1306 = vsub.s32 %v1303, %v1305
    %v1307 = vrot.slane %v1150, %v1306
    %vm1308 = vcmask 1048512
    %v1309 = vsel %vm1308, %v1307, %v1302
    %v1310 = vlaneseq
    %v1311 = vshrl.u32 %v1310, 7
    %v1312 = vsub.s32 %v1200, %v1311
    %v1313 = vrot.slane %v1153, %v1312
    %v1314 = vlaneseq
    %v1315 = vshrl.u32 %v1314, 7
    %v1316 = vsub.s32 %v1205, %v1315
    %v1317 = vrot.slane %v1156, %v1316
    %v1318 = vsel %vm1210, %v1317, %v1313
    %v1319 = vlaneseq
    %v1320 = vshrl.u32 %v1319, 7
    %v1321 = vsub.s32 %v1212, %v1320
    %v1322 = vrot.slane %v1159, %v1321
    %v1323 = vsel %vm1217, %v1322, %v1318
    %v1324 = vlaneseq
    %v1325 = vshrl.u32 %v1324, 7
    %v1326 = vsub.s32 %v1219, %v1325
    %v1327 = vrot.slane %v1162, %v1326
    %v1328 = vsel %vm1224, %v1327, %v1323
    %v1329 = vlaneseq
    %v1330 = vshrl.u32 %v1329, 7
    %v1331 = vsub.s32 %v1226, %v1330
    %v1332 = vrot.slane %v1165, %v1331
    %v1333 = vsel %vm1231, %v1332, %v1328
    %v1334 = vlaneseq
    %v1335 = vshrl.u32 %v1334, 7
    %v1336 = vsub.s32 %v1233, %v1335
    %v1337 = vrot.slane %v1168, %v1336
    %v1338 = vsel %vm1238, %v1337, %v1333
    %v1339 = vlaneseq
    %v1340 = vshrl.u32 %v1339, 7
    %v1341 = vsub.s32 %v1240, %v1340
    %v1342 = vrot.slane %v1171, %v1341
    %v1343 = vsel %vm1245, %v1342, %v1338
    %v1344 = vlaneseq
    %v1345 = vshrl.u32 %v1344, 7
    %v1346 = vsub.s32 %v1247, %v1345
    %v1347 = vrot.slane %v1174, %v1346
    %v1348 = vsel %vm1252, %v1347, %v1343
    %v1349 = vlaneseq
    %v1350 = vshrl.u32 %v1349, 7
    %v1351 = vsub.s32 %v1254, %v1350
    %v1352 = vrot.slane %v1177, %v1351
    %v1353 = vsel %vm1259, %v1352, %v1348
    %v1354 = vlaneseq
    %v1355 = vshrl.u32 %v1354, 7
    %v1356 = vsub.s32 %v1261, %v1355
    %v1357 = vrot.slane %v1180, %v1356
    %v1358 = vsel %vm1266, %v1357, %v1353
    %v1359 = vlaneseq
    %v1360 = vshrl.u32 %v1359, 7
    %v1361 = vsub.s32 %v1268, %v1360
    %v1362 = vrot.slane %v1183, %v1361
    %v1363 = vsel %vm1273, %v1362, %v1358
    %v1364 = vlaneseq
    %v1365 = vshrl.u32 %v1364, 7
    %v1366 = vsub.s32 %v1275, %v1365
    %v1367 = vrot.slane %v1186, %v1366
    %v1368 = vsel %vm1280, %v1367, %v1363
    %v1369 = vlaneseq
    %v1370 = vshrl.u32 %v1369, 7
    %v1371 = vsub.s32 %v1282, %v1370
    %v1372 = vrot.slane %v1189, %v1371
    %v1373 = vsel %vm1287, %v1372, %v1368
    %v1374 = vlaneseq
    %v1375 = vshrl.u32 %v1374, 7
    %v1376 = vsub.s32 %v1289, %v1375
    %v1377 = vrot.slane %v1192, %v1376
    %v1378 = vsel %vm1294, %v1377, %v1373
    %v1379 = vlaneseq
    %v1380 = vshrl.u32 %v1379, 7
    %v1381 = vsub.s32 %v1296, %v1380
    %v1382 = vrot.slane %v1195, %v1381
    %v1383 = vsel %vm1301, %v1382, %v1378
    %v1384 = vlaneseq
    %v1385 = vshrl.u32 %v1384, 7
    %v1386 = vsub.s32 %v1303, %v1385
    %v1387 = vrot.slane %v1198, %v1386
    %v1388 = vsel %vm1308, %v1387, %v1383
    %vm1389 = vcmask 1041409
    %v1390 = vsel %vm1389, %v1388, %v1309
    %1392 = vst [vmem:[#allocation3] sm:$0x3] %v1390
    // Predicated region
    $region30: #{tpu_custom_call.1} parent=1 // pred_check
      _
    $region31: #{tpu_custom_call.1} parent=1 // pred_check_branch
      %1394 = sbr.rel (0) target = $region33
    $region32: #{tpu_custom_call.1} parent=1 // pred_region
      %s1396 = ssub.s32 32, 32
      %1397 = vsyncadd [#allocation4], %s1396
      %s1399 = sshll.u32 [#allocation3], 4
      %s1400 = int_to_ptr.vmem [resolvable:$true] %s1399
      %1402 = dma.vmem_to_hbm [thread:$0]  %s1400, 32, %s7, [#allocation4]
    $region33: #{tpu_custom_call.1} parent=1 // pred_fallthru
      _
    // Predicated region
    $region34: #{tpu_custom_call.1} parent=1 // pred_check
      _
    $region35: #{tpu_custom_call.1} parent=1 // pred_check_branch
      %1404 = sbr.rel (0) target = $region37
    $region36: #{tpu_custom_call.1} parent=1 // pred_region
      %1405 = dma.done [#allocation4], 32
    $region37: #{tpu_custom_call.1} parent=1 // pred_fallthru
      _
    %1406 = vsyncpa [#allocation4], 1

</llo_original>
